<compile_context>
chip_gen: v7x
topology: tpu7x:2x2x1
jax: 0.10.0
libtpu: 0.0.40
codegen_flags: <defaults>
</compile_context>

<pallas_src>
import jax
import jax.numpy as jnp
from jax.experimental import pallas as pl
from jax.experimental.pallas import tpu as pltpu


def _unsqueezed_shape(in_shape, axes):
    """Replicates sequential torch.unsqueeze(result, dim=a) for a in sorted(axes),
    including negative-axis wrapping relative to the growing rank — exactly what
    OnnxUnsqueezeStaticAxes.forward does."""
    shape = list(in_shape)
    for ax in sorted(axes):
        rank = len(shape)
        a = ax if ax >= 0 else ax + rank + 1
        assert 0 <= a <= rank, f"axis {ax} out of range for rank {rank}"
        shape.insert(a, 1)
    return tuple(shape)


def _hbm_copy_kernel(x_ref, o_ref, sem):
    # Whole-array HBM -> HBM DMA.  No VMEM staging: a copy has zero compute,
    # so the only cost that matters is HBM read + write bandwidth.
    cp = pltpu.make_async_copy(x_ref, o_ref, sem)
    cp.start()
    cp.wait()


def onnx_unsqueeze_static_axes(x, axes, *, force_copy=False):
    """Pallas-backed equivalent of OnnxUnsqueezeStaticAxes(axes).forward(x).

    Default path: metadata-only reshape (no copy — this is the fast path).
    force_copy=True: materialize a fresh output via a single HBM->HBM DMA
    issued from inside a Pallas kernel (benchmark / kernel-exercise path).
    """
    if isinstance(x, tuple):
        x = x[0]
    out_shape = _unsqueezed_shape(x.shape, axes)

    if not force_copy or x.size == 0:
        # Unsqueeze is pure metadata: the fastest "kernel" is no kernel.
        return x.reshape(out_shape)

    nbytes = int(x.size) * jnp.dtype(x.dtype).itemsize

    copied = pl.pallas_call(
        _hbm_copy_kernel,
        out_shape=jax.ShapeDtypeStruct(x.shape, x.dtype),
        in_specs=[pl.BlockSpec(memory_space=pl.ANY)],   # raw HBM ref, no auto-DMA
        out_specs=pl.BlockSpec(memory_space=pl.ANY),    # raw HBM ref, no auto-DMA
        scratch_shapes=[pltpu.SemaphoreType.DMA],       # DMA-completion semaphore
        compiler_params=pltpu.CompilerParams(has_side_effects=True),
        cost_estimate=pl.CostEstimate(
            flops=0, transcendentals=0, bytes_accessed=2 * nbytes),
    )(x)

    # Zero-cost metadata reshape to the unsqueezed target shape.
    return copied.reshape(out_shape)


if __name__ == "__main__":
    key = jax.random.PRNGKey(0)
    # NCHW input, small shapes, as the module's typical use implies.
    x = jax.random.normal(key, (2, 4, 16, 16), dtype=jnp.float32)
    axes = [0, 2]  # static axes passed to OnnxUnsqueezeStaticAxes.__init__

    # Production (metadata-only) path.
    out_meta = onnx_unsqueeze_static_axes(x, axes)

    # Pallas HBM->HBM DMA copy path, exercised explicitly once.
    out = onnx_unsqueeze_static_axes(x, axes, force_copy=True)
    out = jax.block_until_ready(out)

    # Reference: sequential expand_dims, matching torch.unsqueeze semantics.
    ref = x
    for a in sorted(axes):
        ref = jnp.expand_dims(ref, axis=a)

    assert out.shape == ref.shape, (out.shape, ref.shape)
    assert out.dtype == ref.dtype
    assert bool(jnp.array_equal(out, ref))
    assert out_meta.shape == ref.shape
    assert bool(jnp.array_equal(out_meta, ref))

    print("KERNEL_OK")
</pallas_src>

<mosaic_0001>
module attributes {stable_mosaic.version = 11 : i64} {
  func.func @_hbm_copy_kernel(%arg0: memref<2x4x16x16xf32, #tpu.memory_space<any>>, %arg1: memref<2x4x16x16xf32, #tpu.memory_space<any>>, %arg2: memref<!tpu.dma_semaphore, #tpu.memory_space<semaphore_mem>>) attributes {dimension_semantics = [], scalar_prefetch = 0 : i64, scratch_operands = 1 : i64, tpu.core_type = #tpu.core_type<tc>} {
    tpu.enqueue_dma source(%arg0 : memref<2x4x16x16xf32, #tpu.memory_space<any>>) target(%arg1 : memref<2x4x16x16xf32, #tpu.memory_space<any>>) target_semaphore(%arg2 : memref<!tpu.dma_semaphore, #tpu.memory_space<semaphore_mem>>)
    tpu.wait_dma2 semaphore(%arg2 : memref<!tpu.dma_semaphore, #tpu.memory_space<semaphore_mem>>) src(%arg0 : memref<2x4x16x16xf32, #tpu.memory_space<any>>) dst(%arg1 : memref<2x4x16x16xf32, #tpu.memory_space<any>>)
    return
  }
}

</mosaic_0001>

<llo_original>
// kernel: tpu_custom_call.1
$region0: #{tpu_custom_call.1}
  #allocation0 [shape = 'u32[]', space=smem, size = 0x4, offset = 0x4, fixed_abs, tag = 'smem constant byte address 0x4 - core index']
  #allocation1 [shape = 'u32[144,128]{1,0:T(1,128)}', space=vmem, size = 0x12000, scoped, tag = 'internal scratch']
  #allocation2 [shape = 's32[1]{0}', space=sflag, size = 0x4, scoped, tag = 'scratch operand']
  #allocation3 [shape = 's32[]', space=sflag, size = 0x4, offset = 0, fixed_abs, tag = 'sflag constant byte address 0x0 - dummy sync flag']
  #allocation4 [shape = 'u32[0]{0}', space=smem, size = 0, offset = 0, fixed_abs, tag = 'smem constant byte address 0x0 - null']
  %s0 = inlined_call_operand.hbm [shape: f32[2,4,16,16], index: 0, kind: input, shape index: {}]
  %s1 = inlined_call_operand.hbm [shape: f32[2,4,16,16], index: 1, kind: output, shape index: {}]
  %s2 = sld [smem:[#allocation0]]
  $region2: #{tpu_custom_call.1} parent=0
    _
  %s4 = ssub.s32 1, %s2
  %s5 = scalar_select 0, %s4, %s2
  %s7 = sshll.u32 1, 14
  %s8 = sxor.u32 4294967295, %s7
  %s11 = sshll.u32 3, 24
  %s12 = sxor.u32 4294967295, %s11
  %s13 = sand.u32 0, %s12
  %s15 = sor.u32 %s13, 0
  %18 = dma.general %s0, 2048, %s1, [#allocation2], [#allocation3], [#allocation4], %s15, 0
  %s19 = smul.u32 2, 4
  %s20 = smul.u32 %s19, 16
  %s21 = smul.u32 %s20, 1
  %s22 = sshll.u32 %s21, 4
  %23 = dma.done [#allocation2], %s22
  %24 = vsyncmov [#allocation2]
  %s25 = vpop.sfrf %24
  %p26 = scmp.eq.s32.totalorder %s25, 0
  %p27 = pneg %p26
  %29 = shalt.err (%p27)

</llo_original>
